<compile_context>
chip_gen: v7x
topology: tpu7x:2x2x1
jax: 0.10.0
libtpu: 0.0.40
codegen_flags: <defaults>
</compile_context>

<pallas_src>
import functools

import jax
import jax.numpy as jnp
from jax.experimental import pallas as pl
from jax.experimental.pallas import tpu as pltpu


def mhsa_kernel(x_ref, wqkv_ref, bqkv_ref, wfc_ref, bfc_ref, o_ref, attn_scr,
                *, num_heads, head_dim):
    Bt, F_, D = x_ref.shape
    H, hd = num_heads, head_dim
    n = Bt * F_
    cdt = x_ref.dtype                      # compute dtype (bf16 or f32)

    # (Bt, F, D) -> (Bt*F, D): leading-dim merge only (no lane relayout).
    x = x_ref[...].reshape(n, D)

    # Fused Q/K/V projection: one (n, D) x (D, 3D) MXU pass, f32 accumulation.
    # The 1/sqrt(head_dim) scale is already folded into the Q weights/bias.
    qkv = (jnp.dot(x, wqkv_ref[...], preferred_element_type=jnp.float32)
           + bqkv_ref[...])                # (n, 3D) f32

    # Stack heads into the leading batch axis so attention runs as ONE
    # head-batched MXU dispatch instead of H tiny matmuls.
    def stack_heads(base):
        return jnp.concatenate(
            [qkv[:, base + h * hd: base + (h + 1) * hd].reshape(Bt, F_, hd)
             for h in range(H)], axis=0)   # (H*Bt, F, hd)

    q = stack_heads(0).astype(cdt)
    k = stack_heads(D).astype(cdt)
    v = stack_heads(2 * D).astype(cdt)

    # Flash-style batched attention over all (head, batch) pairs at once.
    s = jnp.einsum('bqd,bkd->bqk', q, k, preferred_element_type=jnp.float32)
    m = jnp.max(s, axis=-1, keepdims=True)
    e = jnp.exp(s - m)
    pv = jnp.einsum('bqk,bkd->bqd', e.astype(cdt), v,
                    preferred_element_type=jnp.float32)
    denom = jnp.sum(e, axis=-1, keepdims=True)
    # Normalize AFTER the PV matmul (scales (F, hd) not (F, F)); exact EUP
    # reciprocal keeps numerical parity and stays off the MXU/VPU slots.
    oh = pv * pl.reciprocal(denom, approx=False)      # (H*Bt, F, hd) f32

    # Heads back into lanes via VMEM scratch (static lane-slice stores), then
    # ONE K=D output projection instead of H K=head_dim matmuls + adds.
    for h in range(H):
        attn_scr[:, h * hd:(h + 1) * hd] = oh[h * Bt:(h + 1) * Bt].reshape(n, hd)
    attn = attn_scr[...].astype(cdt)

    out = (jnp.dot(attn, wfc_ref[...], preferred_element_type=jnp.float32)
           + bfc_ref[...])                 # (n, D) f32
    o_ref[...] = out.reshape(Bt, F_, D).astype(o_ref.dtype)


def _vmem_plan():
    """Per-generation VMEM limit, tile budget and minimum #grid steps."""
    kind = ""
    try:
        kind = jax.devices()[0].device_kind.lower()
    except Exception:
        pass
    if "v7" in kind or "7x" in kind:
        # v7x: 64 MiB physical VMEM, 2 TensorCores -> keep >= 2 parallel steps.
        limit, min_steps = 56 * 2**20, 2
    elif "v5" in kind or "v6" in kind or "lite" in kind:
        # v5e / v6e: 128 MiB physical, single TensorCore -> maximal tiles.
        limit, min_steps = 100 * 2**20, 1
    else:
        # Unknown chip: conservative budget, assume 2 cores.
        limit, min_steps = 48 * 2**20, 2
    return limit, limit - 12 * 2**20, min_steps


def _tile_vmem_bytes(bt, F_, D, H, cdt_size):
    """Generous per-grid-step VMEM estimate for a batch tile of size bt."""
    n = bt * F_
    io = 2 * n * D * (cdt_size + 4)        # double-buffered x tile + out tile
    proj = n * 3 * D * (4 + cdt_size)      # qkv (f32) + stacked q/k/v
    scores = 2 * bt * H * F_ * F_ * 4      # scores + exp (f32)
    misc = 5 * n * D * 4                   # pv, oh, attn scratch, out, slack
    return io + proj + scores + misc


def _pick_batch_tile(B, F_, D, H, cdt_size, budget_bytes, min_steps):
    """Largest divisor of B whose tile fits the budget; keep >= min_steps
    grid steps (when possible) so multi-TC chips get parallel work."""
    best = 1
    for bt in range(1, B + 1):
        if B % bt:
            continue
        if B >= min_steps and (B // bt) < min_steps:
            continue
        if _tile_vmem_bytes(bt, F_, D, H, cdt_size) <= budget_bytes:
            best = bt
    return best


def multi_head_self_attention(x, params, num_heads, *,
                              compute_dtype=jnp.bfloat16, batch_tile=None):
    B, F_, D = x.shape
    H = num_heads
    hd = D // H
    wq, bq, wk, bk, wv, bv, wfc, bfc = params
    scale = 1.0 / (hd ** 0.5)

    # Hoist all transposes out of the kernel, fuse Q/K/V into one (D, 3D)
    # weight, and fold the 1/sqrt(head_dim) scale into the Q columns/bias.
    wqkv_t = jnp.concatenate([wq.T * scale, wk.T, wv.T], axis=1)     # (D, 3D)
    wqkv_t = wqkv_t.astype(compute_dtype)
    bqkv = jnp.concatenate([bq * scale, bk, bv]).reshape(1, 3 * D)
    bqkv = bqkv.astype(jnp.float32)
    wfc_t = wfc.T.astype(compute_dtype)                              # (D, D)
    bfc2 = bfc.reshape(1, D).astype(jnp.float32)

    cdt_size = jnp.dtype(compute_dtype).itemsize
    vmem_limit, tile_budget, min_steps = _vmem_plan()
    # Grid-invariant weights/biases are still double-buffered: count them 2x.
    w_bytes = 2 * ((3 * D * D + D * D) * cdt_size + 4 * D * 4)

    if batch_tile is None:
        batch_tile = _pick_batch_tile(B, F_, D, H, cdt_size,
                                      tile_budget - w_bytes, min_steps)
    assert B % batch_tile == 0, "batch_tile must divide the batch size"
    grid = (B // batch_tile,)

    x_c = x.astype(compute_dtype)
    kernel = functools.partial(mhsa_kernel, num_heads=H, head_dim=hd)

    out = pl.pallas_call(
        kernel,
        out_shape=jax.ShapeDtypeStruct((B, F_, D), x.dtype),
        grid_spec=pltpu.PrefetchScalarGridSpec(
            num_scalar_prefetch=0,
            grid=grid,
            in_specs=[
                pl.BlockSpec((batch_tile, F_, D), lambda b: (b, 0, 0)),  # x
                pl.BlockSpec((D, 3 * D), lambda b: (0, 0)),   # fused Wqkv.T
                pl.BlockSpec((1, 3 * D), lambda b: (0, 0)),   # fused bias
                pl.BlockSpec((D, D), lambda b: (0, 0)),       # Wfc.T
                pl.BlockSpec((1, D), lambda b: (0, 0)),       # bfc
            ],
            out_specs=pl.BlockSpec((batch_tile, F_, D), lambda b: (b, 0, 0)),
            scratch_shapes=[pltpu.VMEM((batch_tile * F_, D), jnp.float32)],
        ),
        compiler_params=pltpu.CompilerParams(
            dimension_semantics=("parallel",),
            vmem_limit_bytes=vmem_limit),
    )(x_c, wqkv_t, bqkv, wfc_t, bfc2)
    return out


def reference_mhsa(x, params, num_heads):
    """Pure-JAX reference mirroring the PyTorch module exactly (f32)."""
    wq, bq, wk, bk, wv, bv, wfc, bfc = params
    B, F_, D = x.shape
    hd = D // num_heads
    q = (x @ wq.T + bq).reshape(B, F_, num_heads, hd).transpose(0, 2, 1, 3)
    k = (x @ wk.T + bk).reshape(B, F_, num_heads, hd).transpose(0, 2, 1, 3)
    v = (x @ wv.T + bv).reshape(B, F_, num_heads, hd).transpose(0, 2, 1, 3)
    scores = jnp.einsum("bhqd,bhkd->bhqk", q, k) / (hd ** 0.5)
    w = jax.nn.softmax(scores, axis=-1)
    out = jnp.einsum("bhqk,bhkd->bhqd", w, v)
    out = out.transpose(0, 2, 1, 3).reshape(B, F_, D)
    return out @ wfc.T + bfc


if __name__ == "__main__":
    B, F_, D, H = 2, 8, 32, 4   # batch, num fields (seq), embed_dim, heads

    key = jax.random.PRNGKey(0)
    keys = jax.random.split(key, 9)
    scale = 1.0 / (D ** 0.5)

    x = jax.random.normal(keys[0], (B, F_, D), dtype=jnp.float32)

    wq = jax.random.normal(keys[1], (D, D), dtype=jnp.float32) * scale
    bq = jax.random.normal(keys[2], (D,), dtype=jnp.float32) * scale
    wk = jax.random.normal(keys[3], (D, D), dtype=jnp.float32) * scale
    bk = jax.random.normal(keys[4], (D,), dtype=jnp.float32) * scale
    wv = jax.random.normal(keys[5], (D, D), dtype=jnp.float32) * scale
    bv = jax.random.normal(keys[6], (D,), dtype=jnp.float32) * scale
    wfc = jax.random.normal(keys[7], (D, D), dtype=jnp.float32) * scale
    bfc = jax.random.normal(keys[8], (D,), dtype=jnp.float32) * scale

    params = (wq, bq, wk, bk, wv, bv, wfc, bfc)
    ref = reference_mhsa(x, params, num_heads=H)

    # Exact-precision path: f32 operands, should match the reference closely.
    out_f32 = jax.block_until_ready(
        multi_head_self_attention(x, params, num_heads=H,
                                  compute_dtype=jnp.float32))
    assert out_f32.shape == (B, F_, D)
    err32 = float(jnp.max(jnp.abs(out_f32 - ref)))
    assert err32 < 2e-3, f"f32 path max abs err {err32}"

    # Performance path (default): bf16 operands, f32 accumulation.
    out_bf16 = jax.block_until_ready(
        multi_head_self_attention(x, params, num_heads=H))
    assert out_bf16.shape == (B, F_, D)
    errbf = float(jnp.max(jnp.abs(out_bf16 - ref)))
    assert errbf < 8e-2, f"bf16 path max abs err {errbf}"

    print("KERNEL_OK")
</pallas_src>

<mosaic_0001>
module attributes {stable_mosaic.version = 11 : i64} {
  func.func @mhsa_kernel(%arg0: i32, %arg1: memref<1x8x32xf32, #tpu.memory_space<vmem>>, %arg2: memref<32x96xf32, #tpu.memory_space<vmem>>, %arg3: memref<1x96xf32, #tpu.memory_space<vmem>>, %arg4: memref<32x32xf32, #tpu.memory_space<vmem>>, %arg5: memref<1x32xf32, #tpu.memory_space<vmem>>, %arg6: memref<1x8x32xf32, #tpu.memory_space<vmem>>, %arg7: memref<8x32xf32, #tpu.memory_space<vmem>>) attributes {dimension_semantics = [#tpu.dimension_semantics<parallel>], iteration_bounds = array<i64: 2>, scalar_prefetch = 0 : i64, scratch_operands = 1 : i64, tpu.core_type = #tpu.core_type<tc>, window_params = [{transform_indices = @transform_0, window_bounds = array<i64: 1, 8, 32>}, {pipeline_mode = #tpu.pipeline_mode<synchronous>, transform_indices = @transform_1, window_bounds = array<i64: 32, 96>}, {pipeline_mode = #tpu.pipeline_mode<synchronous>, transform_indices = @transform_2, window_bounds = array<i64: 1, 96>}, {pipeline_mode = #tpu.pipeline_mode<synchronous>, transform_indices = @transform_3, window_bounds = array<i64: 32, 32>}, {pipeline_mode = #tpu.pipeline_mode<synchronous>, transform_indices = @transform_4, window_bounds = array<i64: 1, 32>}, {transform_indices = @transform_5, window_bounds = array<i64: 1, 8, 32>}]} {
    %c0 = arith.constant 0 : index
    %c0_0 = arith.constant 0 : index
    %c0_1 = arith.constant 0 : index
    %0 = vector.load %arg1[%c0, %c0_0, %c0_1] : memref<1x8x32xf32, #tpu.memory_space<vmem>>, vector<1x8x32xf32>
    %1 = vector.shape_cast %0 : vector<1x8x32xf32> to vector<8x32xf32>
    %c0_2 = arith.constant 0 : index
    %c0_3 = arith.constant 0 : index
    %2 = vector.load %arg2[%c0_2, %c0_3] : memref<32x96xf32, #tpu.memory_space<vmem>>, vector<32x96xf32>
    %cst = arith.constant dense<0.000000e+00> : vector<8x96xf32>
    %3 = tpu.matmul %1, %2, %cst {dimension_numbers = #tpu.dot_dimension_numbers<[1], [0], [0], [1], [0, 0, 1, 1], [], []>} : vector<8x32xf32>, vector<32x96xf32>, vector<8x96xf32> -> vector<8x96xf32>
    %c0_4 = arith.constant 0 : index
    %c0_5 = arith.constant 0 : index
    %4 = vector.load %arg3[%c0_4, %c0_5] : memref<1x96xf32, #tpu.memory_space<vmem>>, vector<1x96xf32>
    %5 = vector.broadcast %4 : vector<1x96xf32> to vector<8x96xf32>
    %6 = arith.addf %3, %5 : vector<8x96xf32>
    %7 = vector.extract_strided_slice %6 {offsets = [0, 0], sizes = [8, 8], strides = [1, 1]} : vector<8x96xf32> to vector<8x8xf32>
    %8 = vector.shape_cast %7 : vector<8x8xf32> to vector<1x8x8xf32>
    %9 = vector.extract_strided_slice %6 {offsets = [0, 8], sizes = [8, 8], strides = [1, 1]} : vector<8x96xf32> to vector<8x8xf32>
    %10 = vector.shape_cast %9 : vector<8x8xf32> to vector<1x8x8xf32>
    %11 = vector.extract_strided_slice %6 {offsets = [0, 16], sizes = [8, 8], strides = [1, 1]} : vector<8x96xf32> to vector<8x8xf32>
    %12 = vector.shape_cast %11 : vector<8x8xf32> to vector<1x8x8xf32>
    %13 = vector.extract_strided_slice %6 {offsets = [0, 24], sizes = [8, 8], strides = [1, 1]} : vector<8x96xf32> to vector<8x8xf32>
    %14 = vector.shape_cast %13 : vector<8x8xf32> to vector<1x8x8xf32>
    %15 = tpu.concatenate %8, %10, %12, %14 in 0 : vector<1x8x8xf32>, vector<1x8x8xf32>, vector<1x8x8xf32>, vector<1x8x8xf32> -> vector<4x8x8xf32>
    %16 = vector.extract_strided_slice %6 {offsets = [0, 32], sizes = [8, 8], strides = [1, 1]} : vector<8x96xf32> to vector<8x8xf32>
    %17 = vector.shape_cast %16 : vector<8x8xf32> to vector<1x8x8xf32>
    %18 = vector.extract_strided_slice %6 {offsets = [0, 40], sizes = [8, 8], strides = [1, 1]} : vector<8x96xf32> to vector<8x8xf32>
    %19 = vector.shape_cast %18 : vector<8x8xf32> to vector<1x8x8xf32>
    %20 = vector.extract_strided_slice %6 {offsets = [0, 48], sizes = [8, 8], strides = [1, 1]} : vector<8x96xf32> to vector<8x8xf32>
    %21 = vector.shape_cast %20 : vector<8x8xf32> to vector<1x8x8xf32>
    %22 = vector.extract_strided_slice %6 {offsets = [0, 56], sizes = [8, 8], strides = [1, 1]} : vector<8x96xf32> to vector<8x8xf32>
    %23 = vector.shape_cast %22 : vector<8x8xf32> to vector<1x8x8xf32>
    %24 = tpu.concatenate %17, %19, %21, %23 in 0 : vector<1x8x8xf32>, vector<1x8x8xf32>, vector<1x8x8xf32>, vector<1x8x8xf32> -> vector<4x8x8xf32>
    %25 = vector.extract_strided_slice %6 {offsets = [0, 64], sizes = [8, 8], strides = [1, 1]} : vector<8x96xf32> to vector<8x8xf32>
    %26 = vector.shape_cast %25 : vector<8x8xf32> to vector<1x8x8xf32>
    %27 = vector.extract_strided_slice %6 {offsets = [0, 72], sizes = [8, 8], strides = [1, 1]} : vector<8x96xf32> to vector<8x8xf32>
    %28 = vector.shape_cast %27 : vector<8x8xf32> to vector<1x8x8xf32>
    %29 = vector.extract_strided_slice %6 {offsets = [0, 80], sizes = [8, 8], strides = [1, 1]} : vector<8x96xf32> to vector<8x8xf32>
    %30 = vector.shape_cast %29 : vector<8x8xf32> to vector<1x8x8xf32>
    %31 = vector.extract_strided_slice %6 {offsets = [0, 88], sizes = [8, 8], strides = [1, 1]} : vector<8x96xf32> to vector<8x8xf32>
    %32 = vector.shape_cast %31 : vector<8x8xf32> to vector<1x8x8xf32>
    %33 = tpu.concatenate %26, %28, %30, %32 in 0 : vector<1x8x8xf32>, vector<1x8x8xf32>, vector<1x8x8xf32>, vector<1x8x8xf32> -> vector<4x8x8xf32>
    "tpu.trace_start"() <{level = 10 : i32, message = "bqd,bkd->bqk"}> : () -> ()
    %cst_6 = arith.constant dense<0.000000e+00> : vector<4x8x8xf32>
    %34 = tpu.matmul %15, %24, %cst_6 {dimension_numbers = #tpu.dot_dimension_numbers<[2], [2], [1], [1], [0, 0, 0, 1, 1, 1], [0], [0]>} : vector<4x8x8xf32>, vector<4x8x8xf32>, vector<4x8x8xf32> -> vector<4x8x8xf32>
    "tpu.trace_stop"() : () -> ()
    %cst_7 = arith.constant dense<0xFF800000> : vector<4x8xf32>
    %35 = vector.multi_reduction <maximumf>, %34, %cst_7 [2] : vector<4x8x8xf32> to vector<4x8xf32>
    %36 = vector.shape_cast %35 : vector<4x8xf32> to vector<4x8x1xf32>
    %37 = vector.broadcast %36 : vector<4x8x1xf32> to vector<4x8x8xf32>
    %38 = arith.subf %34, %37 : vector<4x8x8xf32>
    %39 = math.exp %38 : vector<4x8x8xf32>
    "tpu.trace_start"() <{level = 10 : i32, message = "bqk,bkd->bqd"}> : () -> ()
    %cst_8 = arith.constant dense<0.000000e+00> : vector<4x8x8xf32>
    %40 = tpu.matmul %39, %33, %cst_8 {dimension_numbers = #tpu.dot_dimension_numbers<[2], [1], [1], [2], [0, 0, 0, 1, 1, 2], [0], [0]>} : vector<4x8x8xf32>, vector<4x8x8xf32>, vector<4x8x8xf32> -> vector<4x8x8xf32>
    "tpu.trace_stop"() : () -> ()
    %cst_9 = arith.constant dense<0.000000e+00> : vector<4x8xf32>
    %41 = vector.multi_reduction <add>, %39, %cst_9 [2] : vector<4x8x8xf32> to vector<4x8xf32>
    %42 = vector.shape_cast %41 : vector<4x8xf32> to vector<4x8x1xf32>
    %43 = tpu.reciprocal %42 : vector<4x8x1xf32> -> vector<4x8x1xf32>
    %44 = vector.broadcast %43 : vector<4x8x1xf32> to vector<4x8x8xf32>
    %45 = arith.mulf %40, %44 : vector<4x8x8xf32>
    %46 = vector.extract_strided_slice %45 {offsets = [0, 0, 0], sizes = [1, 8, 8], strides = [1, 1, 1]} : vector<4x8x8xf32> to vector<1x8x8xf32>
    %47 = vector.shape_cast %46 : vector<1x8x8xf32> to vector<8x8xf32>
    %c0_10 = arith.constant 0 : index
    %c0_11 = arith.constant 0 : index
    %48 = vector.load %arg7[%c0_10, %c0_11] : memref<8x32xf32, #tpu.memory_space<vmem>>, vector<8x8xf32>
    tpu.vector_store %arg7[%c0_10, %c0_11], %47 {strides = array<i32>} : memref<8x32xf32, #tpu.memory_space<vmem>>, vector<8x8xf32>,
    %49 = vector.extract_strided_slice %45 {offsets = [1, 0, 0], sizes = [1, 8, 8], strides = [1, 1, 1]} : vector<4x8x8xf32> to vector<1x8x8xf32>
    %50 = vector.shape_cast %49 : vector<1x8x8xf32> to vector<8x8xf32>
    %c0_12 = arith.constant 0 : index
    %c8 = arith.constant 8 : index
    %51 = vector.load %arg7[%c0_12, %c8] : memref<8x32xf32, #tpu.memory_space<vmem>>, vector<8x8xf32>
    tpu.vector_store %arg7[%c0_12, %c8], %50 {strides = array<i32>} : memref<8x32xf32, #tpu.memory_space<vmem>>, vector<8x8xf32>,
    %52 = vector.extract_strided_slice %45 {offsets = [2, 0, 0], sizes = [1, 8, 8], strides = [1, 1, 1]} : vector<4x8x8xf32> to vector<1x8x8xf32>
    %53 = vector.shape_cast %52 : vector<1x8x8xf32> to vector<8x8xf32>
    %c0_13 = arith.constant 0 : index
    %c16 = arith.constant 16 : index
    %54 = vector.load %arg7[%c0_13, %c16] : memref<8x32xf32, #tpu.memory_space<vmem>>, vector<8x8xf32>
    tpu.vector_store %arg7[%c0_13, %c16], %53 {strides = array<i32>} : memref<8x32xf32, #tpu.memory_space<vmem>>, vector<8x8xf32>,
    %55 = vector.extract_strided_slice %45 {offsets = [3, 0, 0], sizes = [1, 8, 8], strides = [1, 1, 1]} : vector<4x8x8xf32> to vector<1x8x8xf32>
    %56 = vector.shape_cast %55 : vector<1x8x8xf32> to vector<8x8xf32>
    %c0_14 = arith.constant 0 : index
    %c24 = arith.constant 24 : index
    %57 = vector.load %arg7[%c0_14, %c24] : memref<8x32xf32, #tpu.memory_space<vmem>>, vector<8x8xf32>
    tpu.vector_store %arg7[%c0_14, %c24], %56 {strides = array<i32>} : memref<8x32xf32, #tpu.memory_space<vmem>>, vector<8x8xf32>,
    %c0_15 = arith.constant 0 : index
    %c0_16 = arith.constant 0 : index
    %58 = vector.load %arg7[%c0_15, %c0_16] : memref<8x32xf32, #tpu.memory_space<vmem>>, vector<8x32xf32>
    %c0_17 = arith.constant 0 : index
    %c0_18 = arith.constant 0 : index
    %59 = vector.load %arg4[%c0_17, %c0_18] : memref<32x32xf32, #tpu.memory_space<vmem>>, vector<32x32xf32>
    %cst_19 = arith.constant dense<0.000000e+00> : vector<8x32xf32>
    %60 = tpu.matmul %58, %59, %cst_19 {dimension_numbers = #tpu.dot_dimension_numbers<[1], [0], [0], [1], [0, 0, 1, 1], [], []>} : vector<8x32xf32>, vector<32x32xf32>, vector<8x32xf32> -> vector<8x32xf32>
    %c0_20 = arith.constant 0 : index
    %c0_21 = arith.constant 0 : index
    %61 = vector.load %arg5[%c0_20, %c0_21] : memref<1x32xf32, #tpu.memory_space<vmem>>, vector<1x32xf32>
    %62 = vector.broadcast %61 : vector<1x32xf32> to vector<8x32xf32>
    %63 = arith.addf %60, %62 : vector<8x32xf32>
    %64 = vector.shape_cast %63 : vector<8x32xf32> to vector<1x8x32xf32>
    %c0_22 = arith.constant 0 : index
    %c0_23 = arith.constant 0 : index
    %c0_24 = arith.constant 0 : index
    %65 = vector.load %arg6[%c0_22, %c0_23, %c0_24] : memref<1x8x32xf32, #tpu.memory_space<vmem>>, vector<1x8x32xf32>
    tpu.vector_store %arg6[%c0_22, %c0_23, %c0_24], %64 {strides = array<i32>} : memref<1x8x32xf32, #tpu.memory_space<vmem>>, vector<1x8x32xf32>,
    return
  }
  func.func @transform_0(%arg0: i32) -> (i32, i32, i32) {
    %c0_i32 = arith.constant 0 : i32
    %c0_i32_0 = arith.constant 0 : i32
    %c0_i32_1 = arith.constant 0 : i32
    return %arg0, %c0_i32, %c0_i32_0 : i32, i32, i32
  }
  func.func @transform_1(%arg0: i32) -> (i32, i32) {
    %c0_i32 = arith.constant 0 : i32
    %c0_i32_0 = arith.constant 0 : i32
    %c0_i32_1 = arith.constant 0 : i32
    return %c0_i32, %c0_i32_0 : i32, i32
  }
  func.func @transform_2(%arg0: i32) -> (i32, i32) {
    %c0_i32 = arith.constant 0 : i32
    %c0_i32_0 = arith.constant 0 : i32
    %c0_i32_1 = arith.constant 0 : i32
    return %c0_i32, %c0_i32_0 : i32, i32
  }
  func.func @transform_3(%arg0: i32) -> (i32, i32) {
    %c0_i32 = arith.constant 0 : i32
    %c0_i32_0 = arith.constant 0 : i32
    %c0_i32_1 = arith.constant 0 : i32
    return %c0_i32, %c0_i32_0 : i32, i32
  }
  func.func @transform_4(%arg0: i32) -> (i32, i32) {
    %c0_i32 = arith.constant 0 : i32
    %c0_i32_0 = arith.constant 0 : i32
    %c0_i32_1 = arith.constant 0 : i32
    return %c0_i32, %c0_i32_0 : i32, i32
  }
  func.func @transform_5(%arg0: i32) -> (i32, i32, i32) {
    %c0_i32 = arith.constant 0 : i32
    %c0_i32_0 = arith.constant 0 : i32
    %c0_i32_1 = arith.constant 0 : i32
    return %arg0, %c0_i32, %c0_i32_0 : i32, i32, i32
  }
}

</mosaic_0001>

<llo_original>
// kernel: tpu_custom_call.1
$region0: #{tpu_custom_call.1}
  #allocation0 [shape = 'u32[]', space=smem, size = 0x4, offset = 0x4, fixed_abs, tag = 'smem constant byte address 0x4 - core index']
  #allocation1 [shape = 'u32[144,128]{1,0:T(1,128)}', space=vmem, size = 0x12000, scoped, tag = 'internal scratch']
  #allocation2 [shape = 'f32[8,32]{1,0:T(8,128)}', space=vmem, size = 0x1000, scoped, tag = 'scratch operand']
  %s0 = inlined_call_operand.hbm [shape: f32[2,8,32], index: 0, kind: input, shape index: {}]
  %s1 = inlined_call_operand.hbm [shape: f32[32,96], index: 1, kind: input, shape index: {}]
  %s2 = inlined_call_operand.vmem [shape: f32[1,96], index: 2, kind: input, shape index: {}]
  %s3 = inlined_call_operand.hbm [shape: f32[32,32], index: 3, kind: input, shape index: {}]
  %s4 = inlined_call_operand.vmem [shape: f32[1,32], index: 4, kind: input, shape index: {}]
  %s5 = inlined_call_operand.hbm [shape: f32[2,8,32], index: 5, kind: output, shape index: {}]
  %s6 = sld [smem:[#allocation0]]
  $region65: #{tpu_custom_call.1} parent=0
    _
  %s8 = ssub.s32 1, %s6
  %s9 = scalar_select 0, %s8, %s6
  $region1: #{tpu_custom_call.1} parent=0
    #allocation3 [shape = 'u8[8192]{0}', space=vmem, size = 0x2000, scoped, tag = 'input window, operand 0']
    #allocation4 [shape = 's32[2]{0}', space=sflag, size = 0x8, scoped, tag = 'scoped memory for tpu_custom_call.1']
    #allocation5 [shape = 's32[2]{0}', space=sflag, size = 0x8, scoped, tag = 'scoped memory for tpu_custom_call.1']
    #allocation6 [shape = 'u8[16384]{0}', space=vmem, size = 0x4000, scoped, tag = 'input window, operand 1, single buffered']
    #allocation7 [shape = 's32[1]{0}', space=sflag, size = 0x4, scoped, tag = 'scoped memory for tpu_custom_call.1']
    #allocation8 [shape = 'u8[16384]{0}', space=vmem, size = 0x4000, scoped, tag = 'input window, operand 3, single buffered']
    #allocation9 [shape = 'u8[8192]{0}', space=vmem, size = 0x2000, scoped, tag = 'output window, operand 0']
    %10 = vsyncpa [#allocation4], 0
    %s11 = scalar_lea.sflag [#allocation4], 1
    %12 = vsyncpa %s11, 0
    %13 = vsyncpa [#allocation7], 0
    %14 = vsyncpa [#allocation5], 0
    %s15 = scalar_lea.sflag [#allocation5], 1
    %16 = vsyncpa %s15, 0
    loop: start=0, step=1, limit=4
    $region2: #{tpu_custom_call.1} parent=1 // loop_pre_header
      _
    $region3: #{tpu_custom_call.1} parent=1 // loop_header
      %s18 = sphi 0, %s22
      %p19 = scmp.ge.s32.totalorder %s18, 4
      %s28 = sphi 0, %s30
      %s31 = sphi 0, %s28
      %s32 = sphi 0, %s31
      %s48 = sphi 0, %s32
      %s52 = sphi 0, %s52
      %s54 = sphi 0, %s52
      %s55 = sphi 0, %s54
      %s69 = sphi 0, %s55
      %s73 = sphi 0, %s73
      %s75 = sphi 0, %s73
      %s76 = sphi 0, %s75
      %s90 = sphi 0, %s76
      %s94 = sphi 0, %s94
      %s96 = sphi 0, %s94
      %s97 = sphi 0, %s96
      %s111 = sphi 0, %s97
      %s115 = sphi 0, %s115
      %s117 = sphi 0, %s115
      %s118 = sphi 0, %s117
      %s132 = sphi 0, %s118
      %s138 = sphi 0, %s140
      %s141 = sphi 0, %s138
      %s142 = sphi 0, %s141
      %s158 = sphi 0, %s142
    $region4: #{tpu_custom_call.1} parent=1 // loop_header_branch
      %21 = sbr.rel (%p19) target = $region8
    $region5: #{tpu_custom_call.1} parent=1 // loop_body
      %s23 = ssub.s32 %s18, 1
      %s24 = ssub.s32 %s18, 2
      %s25 = sadd.s32 %s18, 1
      %s26 = ssub.s32 %s18, %s25
      %p27 = scmp.eq.s32.totalorder %s26, 0
      %s29 = sadd.s32 %s28, 1
      %s30 = scalar_select %p27, %s28, %s29
      %p33 = pneg %p27
      %p34 = scmp.eq.s32.totalorder %s18, 1
      %p35 = por %p33, %p34
      %p36 = scmp.ne.s32.totalorder %s28, %s31
      %p37 = scmp.eq.s32.totalorder %s18, 0
      %p38 = por %p36, %p37
      %p39 = scmp.ne.s32.totalorder %s28, %s31
      %p40 = scmp.eq.s32.totalorder %s23, 1
      %p41 = por %p39, %p40
      %p42 = scmp.ne.s32.totalorder %s31, %s32
      %p43 = scmp.eq.s32.totalorder %s23, 0
      %p44 = por %p42, %p43
      %p45 = scmp.ne.s32.totalorder %s31, %s32
      %p46 = scmp.eq.s32.totalorder %s24, 1
      %p47 = por %p45, %p46
      %p49 = scmp.ne.s32.totalorder %s32, %s48
      %p50 = scmp.eq.s32.totalorder %s24, 0
      %p51 = por %p49, %p50
      %s53 = sadd.s32 %s52, 1
      %p56 = scmp.eq.s32.totalorder %s18, 1
      %p57 = scmp.ne.s32.totalorder %s52, %s54
      %p58 = scmp.eq.s32.totalorder %s18, 0
      %p59 = por %p57, %p58
      %p60 = scmp.ne.s32.totalorder %s52, %s54
      %p61 = scmp.eq.s32.totalorder %s23, 1
      %p62 = por %p60, %p61
      %p63 = scmp.ne.s32.totalorder %s54, %s55
      %p64 = scmp.eq.s32.totalorder %s23, 0
      %p65 = por %p63, %p64
      %p66 = scmp.ne.s32.totalorder %s54, %s55
      %p67 = scmp.eq.s32.totalorder %s24, 1
      %p68 = por %p66, %p67
      %p70 = scmp.ne.s32.totalorder %s55, %s69
      %p71 = scmp.eq.s32.totalorder %s24, 0
      %p72 = por %p70, %p71
      %s74 = sadd.s32 %s73, 1
      %p77 = scmp.eq.s32.totalorder %s18, 1
      %p78 = scmp.ne.s32.totalorder %s73, %s75
      %p79 = scmp.eq.s32.totalorder %s18, 0
      %p80 = por %p78, %p79
      %p81 = scmp.ne.s32.totalorder %s73, %s75
      %p82 = scmp.eq.s32.totalorder %s23, 1
      %p83 = por %p81, %p82
      %p84 = scmp.ne.s32.totalorder %s75, %s76
      %p85 = scmp.eq.s32.totalorder %s23, 0
      %p86 = por %p84, %p85
      %p87 = scmp.ne.s32.totalorder %s75, %s76
      %p88 = scmp.eq.s32.totalorder %s24, 1
      %p89 = por %p87, %p88
      %p91 = scmp.ne.s32.totalorder %s76, %s90
      %p92 = scmp.eq.s32.totalorder %s24, 0
      %p93 = por %p91, %p92
      %s95 = sadd.s32 %s94, 1
      %p98 = scmp.eq.s32.totalorder %s18, 1
      %p99 = scmp.ne.s32.totalorder %s94, %s96
      %p100 = scmp.eq.s32.totalorder %s18, 0
      %p101 = por %p99, %p100
      %p102 = scmp.ne.s32.totalorder %s94, %s96
      %p103 = scmp.eq.s32.totalorder %s23, 1
      %p104 = por %p102, %p103
      %p105 = scmp.ne.s32.totalorder %s96, %s97
      %p106 = scmp.eq.s32.totalorder %s23, 0
      %p107 = por %p105, %p106
      %p108 = scmp.ne.s32.totalorder %s96, %s97
      %p109 = scmp.eq.s32.totalorder %s24, 1
      %p110 = por %p108, %p109
      %p112 = scmp.ne.s32.totalorder %s97, %s111
      %p113 = scmp.eq.s32.totalorder %s24, 0
      %p114 = por %p112, %p113
      %s116 = sadd.s32 %s115, 1
      %p119 = scmp.eq.s32.totalorder %s18, 1
      %p120 = scmp.ne.s32.totalorder %s115, %s117
      %p121 = scmp.eq.s32.totalorder %s18, 0
      %p122 = por %p120, %p121
      %p123 = scmp.ne.s32.totalorder %s115, %s117
      %p124 = scmp.eq.s32.totalorder %s23, 1
      %p125 = por %p123, %p124
      %p126 = scmp.ne.s32.totalorder %s117, %s118
      %p127 = scmp.eq.s32.totalorder %s23, 0
      %p128 = por %p126, %p127
      %p129 = scmp.ne.s32.totalorder %s117, %s118
      %p130 = scmp.eq.s32.totalorder %s24, 1
      %p131 = por %p129, %p130
      %p133 = scmp.ne.s32.totalorder %s118, %s132
      %p134 = scmp.eq.s32.totalorder %s24, 0
      %p135 = por %p133, %p134
      %s136 = ssub.s32 %s18, %s25
      %p137 = scmp.eq.s32.totalorder %s136, 0
      %s139 = sadd.s32 %s138, 1
      %s140 = scalar_select %p137, %s138, %s139
      %p143 = pneg %p137
      %p144 = scmp.eq.s32.totalorder %s18, 1
      %p145 = por %p143, %p144
      %p146 = scmp.ne.s32.totalorder %s138, %s141
      %p147 = scmp.eq.s32.totalorder %s18, 0
      %p148 = por %p146, %p147
      %p149 = scmp.ne.s32.totalorder %s138, %s141
      %p150 = scmp.eq.s32.totalorder %s23, 1
      %p151 = por %p149, %p150
      %p152 = scmp.ne.s32.totalorder %s141, %s142
      %p153 = scmp.eq.s32.totalorder %s23, 0
      %p154 = por %p152, %p153
      %p155 = scmp.ne.s32.totalorder %s141, %s142
      %p156 = scmp.eq.s32.totalorder %s24, 1
      %p157 = por %p155, %p156
      %p159 = scmp.ne.s32.totalorder %s142, %s158
      %p160 = scmp.eq.s32.totalorder %s24, 0
      %p161 = por %p159, %p160
      %p162 = scmp.le.s32.totalorder 1, %s18
      %p163 = scmp.lt.s32.totalorder %s18, 3
      %p164 = pnand %p162, %p163
      %p165 = pneg %p164
      // Predicated region
      $region9: #{tpu_custom_call.1} parent=5 // pred_check
        _
      $region10: #{tpu_custom_call.1} parent=5 // pred_check_branch
        %167 = sbr.rel (%p164) target = $region12
      $region11: #{tpu_custom_call.1} parent=5 // pred_region
        %s168 = ssub.s32 %s18, 1
        // Predicated region
        $region13: #{tpu_custom_call.1} parent=11 // pred_check
          %p169 = pneg %p65
        $region14: #{tpu_custom_call.1} parent=11 // pred_check_branch
          %171 = sbr.rel (%p169) target = $region16
        $region15: #{tpu_custom_call.1} parent=11 // pred_region
          %s173 = ssub.s32 512, 512
          %174 = vsyncadd [#allocation7], %s173
          %s175 = sshll.u32 [#allocation6], 4
          %s176 = int_to_ptr.vmem [resolvable:$true] %s175
          %181 = dma.hbm_to_vmem [thread:$0]  %s1, 512, %s176, [#allocation7], 128, 128, 8
        $region16: #{tpu_custom_call.1} parent=11 // pred_fallthru
          _
        // Predicated region
        $region17: #{tpu_custom_call.1} parent=11 // pred_check
          %p182 = pneg %p86
        $region18: #{tpu_custom_call.1} parent=11 // pred_check_branch
          %184 = sbr.rel (%p182) target = $region20
        $region19: #{tpu_custom_call.1} parent=11 // pred_region
          _
        $region20: #{tpu_custom_call.1} parent=11 // pred_fallthru
          _
        // Predicated region
        $region21: #{tpu_custom_call.1} parent=11 // pred_check
          %p185 = pneg %p107
        $region22: #{tpu_custom_call.1} parent=11 // pred_check_branch
          %187 = sbr.rel (%p185) target = $region24
        $region23: #{tpu_custom_call.1} parent=11 // pred_region
          %s189 = ssub.s32 512, 512
          %190 = vsyncadd [#allocation7], %s189
          %s191 = sshll.u32 [#allocation8], 4
          %s192 = int_to_ptr.vmem [resolvable:$true] %s191
          %197 = dma.hbm_to_vmem [thread:$0]  %s3, 512, %s192, [#allocation7], 128, 128, 8
        $region24: #{tpu_custom_call.1} parent=11 // pred_fallthru
          _
        // Predicated region
        $region25: #{tpu_custom_call.1} parent=11 // pred_check
          %p198 = pneg %p128
        $region26: #{tpu_custom_call.1} parent=11 // pred_check_branch
          %200 = sbr.rel (%p198) target = $region28
        $region27: #{tpu_custom_call.1} parent=11 // pred_region
          _
        $region28: #{tpu_custom_call.1} parent=11 // pred_fallthru
          _
      $region12: #{tpu_custom_call.1} parent=5 // pred_fallthru
        _
      %p201 = scmp.lt.s32.totalorder %s18, 2
      // Predicated region
      $region29: #{tpu_custom_call.1} parent=5 // pred_check
        %p202 = pneg %p201
      $region30: #{tpu_custom_call.1} parent=5 // pred_check_branch
        %204 = sbr.rel (%p202) target = $region32
      $region31: #{tpu_custom_call.1} parent=5 // pred_region
        // Predicated region
        $region33: #{tpu_custom_call.1} parent=31 // pred_check
          %p205 = pneg %p38
        $region34: #{tpu_custom_call.1} parent=31 // pred_check_branch
          %207 = sbr.rel (%p205) target = $region36
        $region35: #{tpu_custom_call.1} parent=31 // pred_region
          %s208 = sand.u32 %s28, 1
          %s209 = scalar_lea.sflag [#allocation4], %s208
          %s210 = sand.u32 %s28, 1
          %s211 = smul.addr %s210, 8
          %s212 = scalar_lea.vmem [#allocation3], %s211
          %s214 = ssub.s32 128, 128
          %215 = vsyncadd %s209, %s214
          %s216 = smul.addr %s18, 128
          %s217 = scalar_lea.hbm %s0, %s216
          %s219 = sshll.u32 %s212, 4
          %s220 = int_to_ptr.vmem [resolvable:$true] %s219
          %222 = dma.hbm_to_vmem [thread:$0]  %s217, 128, %s220, %s209
        $region36: #{tpu_custom_call.1} parent=31 // pred_fallthru
          _
      $region32: #{tpu_custom_call.1} parent=5 // pred_fallthru
        _
      %p223 = scmp.le.s32.totalorder 1, %s18
      %p224 = scmp.lt.s32.totalorder %s18, 3
      %p225 = pnand %p223, %p224
      %p226 = pneg %p225
      // Predicated region
      $region37: #{tpu_custom_call.1} parent=5 // pred_check
        _
      $region38: #{tpu_custom_call.1} parent=5 // pred_check_branch
        %228 = sbr.rel (%p225) target = $region40
      $region39: #{tpu_custom_call.1} parent=5 // pred_region
        %s229 = ssub.s32 %s18, 1
        %s230 = sand.u32 %s31, 1
        %s231 = scalar_lea.sflag [#allocation4], %s230
        %s232 = sand.u32 %s31, 1
        %s233 = smul.addr %s232, 8
        %s234 = scalar_lea.vmem [#allocation3], %s233
        // Predicated region
        $region41: #{tpu_custom_call.1} parent=39 // pred_check
          %p235 = pneg %p44
        $region42: #{tpu_custom_call.1} parent=39 // pred_check_branch
          %237 = sbr.rel (%p235) target = $region44
        $region43: #{tpu_custom_call.1} parent=39 // pred_region
          %238 = dma.done %s231, 128
        $region44: #{tpu_custom_call.1} parent=39 // pred_fallthru
          _
        // Predicated region
        $region45: #{tpu_custom_call.1} parent=39 // pred_check
          %p239 = pneg %p65
        $region46: #{tpu_custom_call.1} parent=39 // pred_check_branch
          %241 = sbr.rel (%p239) target = $region48
        $region47: #{tpu_custom_call.1} parent=39 // pred_region
          %242 = dma.done [#allocation7], 512
        $region48: #{tpu_custom_call.1} parent=39 // pred_fallthru
          _
        // Predicated region
        $region49: #{tpu_custom_call.1} parent=39 // pred_check
          %p243 = pneg %p107
        $region50: #{tpu_custom_call.1} parent=39 // pred_check_branch
          %245 = sbr.rel (%p243) target = $region52
        $region51: #{tpu_custom_call.1} parent=39 // pred_region
          %246 = dma.done [#allocation7], 512
        $region52: #{tpu_custom_call.1} parent=39 // pred_fallthru
          _
        %s247 = sand.u32 %s31, 1
        %s248 = scalar_lea.sflag [#allocation4], %s247
        %s249 = sand.u32 %s31, 1
        %s250 = smul.addr %s249, 8
        %s251 = scalar_lea.vmem [#allocation3], %s250
        %p252 = pneg %p44
        %p253 = pneg %p41
        %p254 = pneg %p65
        %p255 = pneg %p62
        %p256 = pneg %p86
        %p257 = pneg %p83
        %p258 = pneg %p107
        %p259 = pneg %p104
        %p260 = pneg %p128
        %p261 = pneg %p125
        %p262 = pneg %p154
        %p263 = pneg %p151
        %s264 = sand.u32 %s141, 1
        %s265 = scalar_lea.sflag [#allocation5], %s264
        %s266 = sand.u32 %s141, 1
        %s267 = smul.addr %s266, 8
        %s268 = scalar_lea.vmem [#allocation9], %s267
        %v269 = vld [vmem:[%s234] sm:$0xff]
        %v270 = vld [vmem:[#allocation6] sm:$0xff]
        %v271 = vld [vmem:[#allocation6 + $0x8] sm:$0xff]
        %v272 = vld [vmem:[#allocation6 + $0x10] sm:$0xff]
        %v273 = vld [vmem:[#allocation6 + $0x18] sm:$0xff]
        %v274 = vld [vmem:[%s2] sm:$0x1]
        %v276 = vlaneseq
        %v277 = vshrl.u32 %v276, 7
        %v278 = vsub.s32 0, %v277
        %v279 = vrot.slane %v274, %v278
        %vm281 = vcmask 261120
        %v283 = vsel %vm281, %v269, 0
        %285 = vmatprep.subr.mxu0 0.0
        %286 = vmatpush1.msra.mxu0 %v270
        %287 = vmatprep.subr.mxu0 0.0
        %288 = vmatpush1.msra.mxu0 %v271
        %289 = vmatprep.subr.mxu0 0.0
        %290 = vmatpush1.msra.mxu0 %v272
        %291 = vmatprep.subr.mxu0 0.0
        %292 = vmatpush1.msra.mxu0 %v273
        %293 = vmatprep.subr.mxu0 0.0
        %294 = vmatpush1.msra.mxu0 0.0
        %295 = vmatprep.subr.mxu0 0.0
        %296 = vmatpush1.msra.mxu0 0.0
        %297 = vmatprep.subr.mxu0 0.0
        %298 = vmatpush1.msra.mxu0 0.0
        %299 = vmatprep.subr.mxu0 0.0
        %300 = vmatpush1.msra.mxu0 0.0
        %301 = vmatprep.subr.mxu0 0.0
        %302 = vmatpush1.msra.mxu0 0.0
        %303 = vmatprep.subr.mxu0 0.0
        %304 = vmatpush1.msra.mxu0 0.0
        %305 = vmatprep.subr.mxu0 0.0
        %306 = vmatpush1.msra.mxu0 0.0
        %307 = vmatprep.subr.mxu0 0.0
        %308 = vmatpush1.msra.mxu0 0.0
        %309 = vmatprep.subr.mxu0 0.0
        %310 = vmatpush1.msra.mxu0 0.0
        %311 = vmatprep.subr.mxu0 0.0
        %312 = vmatpush1.msra.mxu0 0.0
        %313 = vmatprep.subr.mxu0 0.0
        %314 = vmatpush1.msra.mxu0 0.0
        %315 = vmatprep.subr.mxu0 0.0
        %316 = vmatpush1.msra.mxu0 0.0
        %317 = vmatprep.subr.mxu0 0.0
        %318 = vmatpush1.msra.mxu0 0.0
        %319 = vmatprep.subr.mxu0 0.0
        %320 = vmatpush1.msra.mxu0 0.0
        %321 = vmatprep.subr.mxu0 0.0
        %322 = vmatpush1.msra.mxu0 0.0
        %323 = vmatprep.subr.mxu0 0.0
        %324 = vmatpush1.msra.mxu0 0.0
        %325 = vmatprep.subr.mxu0 0.0
        %326 = vmatpush1.msra.mxu0 0.0
        %327 = vmatprep.subr.mxu0 0.0
        %328 = vmatpush1.msra.mxu0 0.0
        %329 = vmatprep.subr.mxu0 0.0
        %330 = vmatpush1.msra.mxu0 0.0
        %331 = vmatprep.subr.mxu0 0.0
        %332 = vmatpush1.msra.mxu0 0.0
        %333 = vmatprep.subr.mxu0 0.0
        %334 = vmatpush1.msra.mxu0 0.0
        %335 = vmatprep.subr.mxu0 0.0
        %336 = vmatpush1.msra.mxu0 0.0
        %337 = vmatprep.subr.mxu0 0.0
        %338 = vmatpush1.msra.mxu0 0.0
        %339 = vmatprep.subr.mxu0 0.0
        %340 = vmatpush1.msra.mxu0 0.0
        %341 = vmatprep.subr.mxu0 0.0
        %342 = vmatpush1.msra.mxu0 0.0
        %343 = vmatprep.subr.mxu0 0.0
        %344 = vmatpush1.msra.mxu0 0.0
        %345 = vmatprep.subr.mxu0 0.0
        %346 = vmatpush1.msra.mxu0 0.0
        %347 = vmatprep.subr.mxu0 0.0
        %348 = vmatpush1.msra.mxu0 0.0
        %349 = vmatprep.mubr.f32.mxu0 0.0
        %350 = vmatmul.mubr.f32.gmra.mrb[0].mxu0 %v283
        %v351 = vpop.f32.mrb[0].mxu0
        %v352 = vadd.f32 %v279, %v351
        %v353 = vpop.f32.mrb[0].mxu0
        %354 = vdwg.mxu0
        %356 = vrot.lane.b32.xlu0 %v352, 120
        %v357 = vpop.permute.xlu0 %356
        %358 = vrot.lane.b32.xlu0 %v352, 112
        %v359 = vpop.permute.xlu0 %358
        %360 = vrot.lane.b32.xlu0 %v352, 104
        %v361 = vpop.permute.xlu0 %360
        %362 = vrot.lane.b32.xlu0 %v352, 96
        %v363 = vpop.permute.xlu0 %362
        %vm364 = vcmask 64512
        %v365 = vsel %vm364, %v352, 0
        %v367 = vsel %vm364, %v363, 0
        %369 = vmatprep.subr.mxu0 0.0
        %370 = vmatpush1.xpose.msra.mxu0 %v367
        %371 = vmatprep.subr.mxu0 0.0
        %372 = vmatpush1.xpose.msra.mxu0 0.0
        %373 = vmatprep.subr.mxu0 0.0
        %374 = vmatpush1.xpose.msra.mxu0 0.0
        %375 = vmatprep.subr.mxu0 0.0
        %376 = vmatpush1.xpose.msra.mxu0 0.0
        %377 = vmatprep.subr.mxu0 0.0
        %378 = vmatpush1.xpose.msra.mxu0 0.0
        %379 = vmatprep.subr.mxu0 0.0
        %380 = vmatpush1.xpose.msra.mxu0 0.0
        %381 = vmatprep.subr.mxu0 0.0
        %382 = vmatpush1.xpose.msra.mxu0 0.0
        %383 = vmatprep.subr.mxu0 0.0
        %384 = vmatpush1.xpose.msra.mxu0 0.0
        %385 = vmatprep.subr.mxu0 0.0
        %386 = vmatpush1.xpose.msra.mxu0 0.0
        %387 = vmatprep.subr.mxu0 0.0
        %388 = vmatpush1.xpose.msra.mxu0 0.0
        %389 = vmatprep.subr.mxu0 0.0
        %390 = vmatpush1.xpose.msra.mxu0 0.0
        %391 = vmatprep.subr.mxu0 0.0
        %392 = vmatpush1.xpose.msra.mxu0 0.0
        %393 = vmatprep.subr.mxu0 0.0
        %394 = vmatpush1.xpose.msra.mxu0 0.0
        %395 = vmatprep.subr.mxu0 0.0
        %396 = vmatpush1.xpose.msra.mxu0 0.0
        %397 = vmatprep.subr.mxu0 0.0
        %398 = vmatpush1.xpose.msra.mxu0 0.0
        %399 = vmatprep.subr.mxu0 0.0
        %400 = vmatpush1.xpose.msra.mxu0 0.0
        %401 = vmatprep.subr.mxu0 0.0
        %402 = vmatpush1.xpose.msra.mxu0 0.0
        %403 = vmatprep.subr.mxu0 0.0
        %404 = vmatpush1.xpose.msra.mxu0 0.0
        %405 = vmatprep.subr.mxu0 0.0
        %406 = vmatpush1.xpose.msra.mxu0 0.0
        %407 = vmatprep.subr.mxu0 0.0
        %408 = vmatpush1.xpose.msra.mxu0 0.0
        %409 = vmatprep.subr.mxu0 0.0
        %410 = vmatpush1.xpose.msra.mxu0 0.0
        %411 = vmatprep.subr.mxu0 0.0
        %412 = vmatpush1.xpose.msra.mxu0 0.0
        %413 = vmatprep.subr.mxu0 0.0
        %414 = vmatpush1.xpose.msra.mxu0 0.0
        %415 = vmatprep.subr.mxu0 0.0
        %416 = vmatpush1.xpose.msra.mxu0 0.0
        %417 = vmatprep.subr.mxu0 0.0
        %418 = vmatpush1.xpose.msra.mxu0 0.0
        %419 = vmatprep.subr.mxu0 0.0
        %420 = vmatpush1.xpose.msra.mxu0 0.0
        %421 = vmatprep.subr.mxu0 0.0
        %422 = vmatpush1.xpose.msra.mxu0 0.0
        %423 = vmatprep.subr.mxu0 0.0
        %424 = vmatpush1.xpose.msra.mxu0 0.0
        %425 = vmatprep.subr.mxu0 0.0
        %426 = vmatpush1.xpose.msra.mxu0 0.0
        %427 = vmatprep.subr.mxu0 0.0
        %428 = vmatpush1.xpose.msra.mxu0 0.0
        %429 = vmatprep.subr.mxu0 0.0
        %430 = vmatpush1.xpose.msra.mxu0 0.0
        %431 = vmatprep.subr.mxu0 0.0
        %432 = vmatpush1.xpose.msra.mxu0 0.0
        %433 = vmatprep.mubr.f32.mxu0 0.0
        %434 = vmatmul.mubr.f32.gmra.mrb[0].mxu0 %v365
        %v435 = vpop.f32.mrb[0].mxu0
        %v436 = vadd.f32 0.0, %v435
        %v437 = vpop.f32.mrb[0].mxu0
        %438 = vdwg.mxu0
        %439 = vrot.lane.b32.xlu0 %v357, 96
        %v440 = vpop.permute.xlu0 %439
        %v441 = vsel %vm364, %v357, 0
        %v443 = vsel %vm364, %v440, 0
        %445 = vmatprep.subr.mxu0 0.0
        %446 = vmatpush1.xpose.msra.mxu0 %v443
        %447 = vmatprep.subr.mxu0 0.0
        %448 = vmatpush1.xpose.msra.mxu0 0.0
        %449 = vmatprep.subr.mxu0 0.0
        %450 = vmatpush1.xpose.msra.mxu0 0.0
        %451 = vmatprep.subr.mxu0 0.0
        %452 = vmatpush1.xpose.msra.mxu0 0.0
        %453 = vmatprep.subr.mxu0 0.0
        %454 = vmatpush1.xpose.msra.mxu0 0.0
        %455 = vmatprep.subr.mxu0 0.0
        %456 = vmatpush1.xpose.msra.mxu0 0.0
        %457 = vmatprep.subr.mxu0 0.0
        %458 = vmatpush1.xpose.msra.mxu0 0.0
        %459 = vmatprep.subr.mxu0 0.0
        %460 = vmatpush1.xpose.msra.mxu0 0.0
        %461 = vmatprep.subr.mxu0 0.0
        %462 = vmatpush1.xpose.msra.mxu0 0.0
        %463 = vmatprep.subr.mxu0 0.0
        %464 = vmatpush1.xpose.msra.mxu0 0.0
        %465 = vmatprep.subr.mxu0 0.0
        %466 = vmatpush1.xpose.msra.mxu0 0.0
        %467 = vmatprep.subr.mxu0 0.0
        %468 = vmatpush1.xpose.msra.mxu0 0.0
        %469 = vmatprep.subr.mxu0 0.0
        %470 = vmatpush1.xpose.msra.mxu0 0.0
        %471 = vmatprep.subr.mxu0 0.0
        %472 = vmatpush1.xpose.msra.mxu0 0.0
        %473 = vmatprep.subr.mxu0 0.0
        %474 = vmatpush1.xpose.msra.mxu0 0.0
        %475 = vmatprep.subr.mxu0 0.0
        %476 = vmatpush1.xpose.msra.mxu0 0.0
        %477 = vmatprep.subr.mxu0 0.0
        %478 = vmatpush1.xpose.msra.mxu0 0.0
        %479 = vmatprep.subr.mxu0 0.0
        %480 = vmatpush1.xpose.msra.mxu0 0.0
        %481 = vmatprep.subr.mxu0 0.0
        %482 = vmatpush1.xpose.msra.mxu0 0.0
        %483 = vmatprep.subr.mxu0 0.0
        %484 = vmatpush1.xpose.msra.mxu0 0.0
        %485 = vmatprep.subr.mxu0 0.0
        %486 = vmatpush1.xpose.msra.mxu0 0.0
        %487 = vmatprep.subr.mxu0 0.0
        %488 = vmatpush1.xpose.msra.mxu0 0.0
        %489 = vmatprep.subr.mxu0 0.0
        %490 = vmatpush1.xpose.msra.mxu0 0.0
        %491 = vmatprep.subr.mxu0 0.0
        %492 = vmatpush1.xpose.msra.mxu0 0.0
        %493 = vmatprep.subr.mxu0 0.0
        %494 = vmatpush1.xpose.msra.mxu0 0.0
        %495 = vmatprep.subr.mxu0 0.0
        %496 = vmatpush1.xpose.msra.mxu0 0.0
        %497 = vmatprep.subr.mxu0 0.0
        %498 = vmatpush1.xpose.msra.mxu0 0.0
        %499 = vmatprep.subr.mxu0 0.0
        %500 = vmatpush1.xpose.msra.mxu0 0.0
        %501 = vmatprep.subr.mxu0 0.0
        %502 = vmatpush1.xpose.msra.mxu0 0.0
        %503 = vmatprep.subr.mxu0 0.0
        %504 = vmatpush1.xpose.msra.mxu0 0.0
        %505 = vmatprep.subr.mxu0 0.0
        %506 = vmatpush1.xpose.msra.mxu0 0.0
        %507 = vmatprep.subr.mxu0 0.0
        %508 = vmatpush1.xpose.msra.mxu0 0.0
        %509 = vmatprep.mubr.f32.mxu0 0.0
        %510 = vmatmul.mubr.f32.gmra.mrb[0].mxu0 %v441
        %v511 = vpop.f32.mrb[0].mxu0
        %v512 = vadd.f32 0.0, %v511
        %v513 = vpop.f32.mrb[0].mxu0
        %514 = vdwg.mxu0
        %515 = vrot.lane.b32.xlu0 %v359, 96
        %v516 = vpop.permute.xlu0 %515
        %v517 = vsel %vm364, %v359, 0
        %v519 = vsel %vm364, %v516, 0
        %521 = vmatprep.subr.mxu0 0.0
        %522 = vmatpush1.xpose.msra.mxu0 %v519
        %523 = vmatprep.subr.mxu0 0.0
        %524 = vmatpush1.xpose.msra.mxu0 0.0
        %525 = vmatprep.subr.mxu0 0.0
        %526 = vmatpush1.xpose.msra.mxu0 0.0
        %527 = vmatprep.subr.mxu0 0.0
        %528 = vmatpush1.xpose.msra.mxu0 0.0
        %529 = vmatprep.subr.mxu0 0.0
        %530 = vmatpush1.xpose.msra.mxu0 0.0
        %531 = vmatprep.subr.mxu0 0.0
        %532 = vmatpush1.xpose.msra.mxu0 0.0
        %533 = vmatprep.subr.mxu0 0.0
        %534 = vmatpush1.xpose.msra.mxu0 0.0
        %535 = vmatprep.subr.mxu0 0.0
        %536 = vmatpush1.xpose.msra.mxu0 0.0
        %537 = vmatprep.subr.mxu0 0.0
        %538 = vmatpush1.xpose.msra.mxu0 0.0
        %539 = vmatprep.subr.mxu0 0.0
        %540 = vmatpush1.xpose.msra.mxu0 0.0
        %541 = vmatprep.subr.mxu0 0.0
        %542 = vmatpush1.xpose.msra.mxu0 0.0
        %543 = vmatprep.subr.mxu0 0.0
        %544 = vmatpush1.xpose.msra.mxu0 0.0
        %545 = vmatprep.subr.mxu0 0.0
        %546 = vmatpush1.xpose.msra.mxu0 0.0
        %547 = vmatprep.subr.mxu0 0.0
        %548 = vmatpush1.xpose.msra.mxu0 0.0
        %549 = vmatprep.subr.mxu0 0.0
        %550 = vmatpush1.xpose.msra.mxu0 0.0
        %551 = vmatprep.subr.mxu0 0.0
        %552 = vmatpush1.xpose.msra.mxu0 0.0
        %553 = vmatprep.subr.mxu0 0.0
        %554 = vmatpush1.xpose.msra.mxu0 0.0
        %555 = vmatprep.subr.mxu0 0.0
        %556 = vmatpush1.xpose.msra.mxu0 0.0
        %557 = vmatprep.subr.mxu0 0.0
        %558 = vmatpush1.xpose.msra.mxu0 0.0
        %559 = vmatprep.subr.mxu0 0.0
        %560 = vmatpush1.xpose.msra.mxu0 0.0
        %561 = vmatprep.subr.mxu0 0.0
        %562 = vmatpush1.xpose.msra.mxu0 0.0
        %563 = vmatprep.subr.mxu0 0.0
        %564 = vmatpush1.xpose.msra.mxu0 0.0
        %565 = vmatprep.subr.mxu0 0.0
        %566 = vmatpush1.xpose.msra.mxu0 0.0
        %567 = vmatprep.subr.mxu0 0.0
        %568 = vmatpush1.xpose.msra.mxu0 0.0
        %569 = vmatprep.subr.mxu0 0.0
        %570 = vmatpush1.xpose.msra.mxu0 0.0
        %571 = vmatprep.subr.mxu0 0.0
        %572 = vmatpush1.xpose.msra.mxu0 0.0
        %573 = vmatprep.subr.mxu0 0.0
        %574 = vmatpush1.xpose.msra.mxu0 0.0
        %575 = vmatprep.subr.mxu0 0.0
        %576 = vmatpush1.xpose.msra.mxu0 0.0
        %577 = vmatprep.subr.mxu0 0.0
        %578 = vmatpush1.xpose.msra.mxu0 0.0
        %579 = vmatprep.subr.mxu0 0.0
        %580 = vmatpush1.xpose.msra.mxu0 0.0
        %581 = vmatprep.subr.mxu0 0.0
        %582 = vmatpush1.xpose.msra.mxu0 0.0
        %583 = vmatprep.subr.mxu0 0.0
        %584 = vmatpush1.xpose.msra.mxu0 0.0
        %585 = vmatprep.mubr.f32.mxu0 0.0
        %586 = vmatmul.mubr.f32.gmra.mrb[0].mxu0 %v517
        %v587 = vpop.f32.mrb[0].mxu0
        %v588 = vadd.f32 0.0, %v587
        %v589 = vpop.f32.mrb[0].mxu0
        %590 = vdwg.mxu0
        %591 = vrot.lane.b32.xlu0 %v361, 96
        %v592 = vpop.permute.xlu0 %591
        %v593 = vsel %vm364, %v361, 0
        %v595 = vsel %vm364, %v592, 0
        %597 = vmatprep.subr.mxu0 0.0
        %598 = vmatpush1.xpose.msra.mxu0 %v595
        %599 = vmatprep.subr.mxu0 0.0
        %600 = vmatpush1.xpose.msra.mxu0 0.0
        %601 = vmatprep.subr.mxu0 0.0
        %602 = vmatpush1.xpose.msra.mxu0 0.0
        %603 = vmatprep.subr.mxu0 0.0
        %604 = vmatpush1.xpose.msra.mxu0 0.0
        %605 = vmatprep.subr.mxu0 0.0
        %606 = vmatpush1.xpose.msra.mxu0 0.0
        %607 = vmatprep.subr.mxu0 0.0
        %608 = vmatpush1.xpose.msra.mxu0 0.0
        %609 = vmatprep.subr.mxu0 0.0
        %610 = vmatpush1.xpose.msra.mxu0 0.0
        %611 = vmatprep.subr.mxu0 0.0
        %612 = vmatpush1.xpose.msra.mxu0 0.0
        %613 = vmatprep.subr.mxu0 0.0
        %614 = vmatpush1.xpose.msra.mxu0 0.0
        %615 = vmatprep.subr.mxu0 0.0
        %616 = vmatpush1.xpose.msra.mxu0 0.0
        %617 = vmatprep.subr.mxu0 0.0
        %618 = vmatpush1.xpose.msra.mxu0 0.0
        %619 = vmatprep.subr.mxu0 0.0
        %620 = vmatpush1.xpose.msra.mxu0 0.0
        %621 = vmatprep.subr.mxu0 0.0
        %622 = vmatpush1.xpose.msra.mxu0 0.0
        %623 = vmatprep.subr.mxu0 0.0
        %624 = vmatpush1.xpose.msra.mxu0 0.0
        %625 = vmatprep.subr.mxu0 0.0
        %626 = vmatpush1.xpose.msra.mxu0 0.0
        %627 = vmatprep.subr.mxu0 0.0
        %628 = vmatpush1.xpose.msra.mxu0 0.0
        %629 = vmatprep.subr.mxu0 0.0
        %630 = vmatpush1.xpose.msra.mxu0 0.0
        %631 = vmatprep.subr.mxu0 0.0
        %632 = vmatpush1.xpose.msra.mxu0 0.0
        %633 = vmatprep.subr.mxu0 0.0
        %634 = vmatpush1.xpose.msra.mxu0 0.0
        %635 = vmatprep.subr.mxu0 0.0
        %636 = vmatpush1.xpose.msra.mxu0 0.0
        %637 = vmatprep.subr.mxu0 0.0
        %638 = vmatpush1.xpose.msra.mxu0 0.0
        %639 = vmatprep.subr.mxu0 0.0
        %640 = vmatpush1.xpose.msra.mxu0 0.0
        %641 = vmatprep.subr.mxu0 0.0
        %642 = vmatpush1.xpose.msra.mxu0 0.0
        %643 = vmatprep.subr.mxu0 0.0
        %644 = vmatpush1.xpose.msra.mxu0 0.0
        %645 = vmatprep.subr.mxu0 0.0
        %646 = vmatpush1.xpose.msra.mxu0 0.0
        %647 = vmatprep.subr.mxu0 0.0
        %648 = vmatpush1.xpose.msra.mxu0 0.0
        %649 = vmatprep.subr.mxu0 0.0
        %650 = vmatpush1.xpose.msra.mxu0 0.0
        %651 = vmatprep.subr.mxu0 0.0
        %652 = vmatpush1.xpose.msra.mxu0 0.0
        %653 = vmatprep.subr.mxu0 0.0
        %654 = vmatpush1.xpose.msra.mxu0 0.0
        %655 = vmatprep.subr.mxu0 0.0
        %656 = vmatpush1.xpose.msra.mxu0 0.0
        %657 = vmatprep.subr.mxu0 0.0
        %658 = vmatpush1.xpose.msra.mxu0 0.0
        %659 = vmatprep.subr.mxu0 0.0
        %660 = vmatpush1.xpose.msra.mxu0 0.0
        %661 = vmatprep.mubr.f32.mxu0 0.0
        %662 = vmatmul.mubr.f32.gmra.mrb[0].mxu0 %v593
        %v663 = vpop.f32.mrb[0].mxu0
        %v664 = vadd.f32 0.0, %v663
        %v665 = vpop.f32.mrb[0].mxu0
        %666 = vdwg.mxu0
        %v667 = vsel %vm364, %v436, -inf
        %668 = vmax.xlane.f32.xlu0 %v667
        %v669 = vpop.xlane.xlu0 %668
        %v670 = vsel %vm364, %v512, -inf
        %671 = vmax.xlane.f32.xlu0 %v670
        %v672 = vpop.xlane.xlu0 %671
        %v673 = vsel %vm364, %v588, -inf
        %674 = vmax.xlane.f32.xlu0 %v673
        %v675 = vpop.xlane.xlu0 %674
        %v676 = vsel %vm364, %v664, -inf
        %677 = vmax.xlane.f32.xlu0 %v676
        %v678 = vpop.xlane.xlu0 %677
        %v679 = vsub.f32 %v436, %v669
        %v680 = vsub.f32 %v512, %v672
        %v681 = vsub.f32 %v588, %v675
        %v682 = vsub.f32 %v664, %v678
        %v683 = vmul.f32 %v679, 1.442695
        %v684 = vpow.pop %v683
        %v685 = vmul.f32 %v680, 1.442695
        %v686 = vpow.pop %v685
        %v687 = vmul.f32 %v681, 1.442695
        %v688 = vpow.pop %v687
        %v689 = vmul.f32 %v682, 1.442695
        %v690 = vpow.pop %v689
        %691 = vrot.lane.b32.xlu0 %v352, 64
        %v692 = vpop.permute.xlu0 %691
        %v695 = vsel %vm364, %v684, 0
        %697 = vmatprep.subr.mxu0 0.0
        %698 = vmatpush1.msra.mxu0 %v692
        %699 = vmatprep.subr.mxu0 0.0
        %700 = vmatpush1.msra.mxu0 0.0
        %701 = vmatprep.subr.mxu0 0.0
        %702 = vmatpush1.msra.mxu0 0.0
        %703 = vmatprep.subr.mxu0 0.0
        %704 = vmatpush1.msra.mxu0 0.0
        %705 = vmatprep.subr.mxu0 0.0
        %706 = vmatpush1.msra.mxu0 0.0
        %707 = vmatprep.subr.mxu0 0.0
        %708 = vmatpush1.msra.mxu0 0.0
        %709 = vmatprep.subr.mxu0 0.0
        %710 = vmatpush1.msra.mxu0 0.0
        %711 = vmatprep.subr.mxu0 0.0
        %712 = vmatpush1.msra.mxu0 0.0
        %713 = vmatprep.subr.mxu0 0.0
        %714 = vmatpush1.msra.mxu0 0.0
        %715 = vmatprep.subr.mxu0 0.0
        %716 = vmatpush1.msra.mxu0 0.0
        %717 = vmatprep.subr.mxu0 0.0
        %718 = vmatpush1.msra.mxu0 0.0
        %719 = vmatprep.subr.mxu0 0.0
        %720 = vmatpush1.msra.mxu0 0.0
        %721 = vmatprep.subr.mxu0 0.0
        %722 = vmatpush1.msra.mxu0 0.0
        %723 = vmatprep.subr.mxu0 0.0
        %724 = vmatpush1.msra.mxu0 0.0
        %725 = vmatprep.subr.mxu0 0.0
        %726 = vmatpush1.msra.mxu0 0.0
        %727 = vmatprep.subr.mxu0 0.0
        %728 = vmatpush1.msra.mxu0 0.0
        %729 = vmatprep.subr.mxu0 0.0
        %730 = vmatpush1.msra.mxu0 0.0
        %731 = vmatprep.subr.mxu0 0.0
        %732 = vmatpush1.msra.mxu0 0.0
        %733 = vmatprep.subr.mxu0 0.0
        %734 = vmatpush1.msra.mxu0 0.0
        %735 = vmatprep.subr.mxu0 0.0
        %736 = vmatpush1.msra.mxu0 0.0
        %737 = vmatprep.subr.mxu0 0.0
        %738 = vmatpush1.msra.mxu0 0.0
        %739 = vmatprep.subr.mxu0 0.0
        %740 = vmatpush1.msra.mxu0 0.0
        %741 = vmatprep.subr.mxu0 0.0
        %742 = vmatpush1.msra.mxu0 0.0
        %743 = vmatprep.subr.mxu0 0.0
        %744 = vmatpush1.msra.mxu0 0.0
        %745 = vmatprep.subr.mxu0 0.0
        %746 = vmatpush1.msra.mxu0 0.0
        %747 = vmatprep.subr.mxu0 0.0
        %748 = vmatpush1.msra.mxu0 0.0
        %749 = vmatprep.subr.mxu0 0.0
        %750 = vmatpush1.msra.mxu0 0.0
        %751 = vmatprep.subr.mxu0 0.0
        %752 = vmatpush1.msra.mxu0 0.0
        %753 = vmatprep.subr.mxu0 0.0
        %754 = vmatpush1.msra.mxu0 0.0
        %755 = vmatprep.subr.mxu0 0.0
        %756 = vmatpush1.msra.mxu0 0.0
        %757 = vmatprep.subr.mxu0 0.0
        %758 = vmatpush1.msra.mxu0 0.0
        %759 = vmatprep.subr.mxu0 0.0
        %760 = vmatpush1.msra.mxu0 0.0
        %761 = vmatprep.mubr.f32.mxu0 0.0
        %762 = vmatmul.mubr.f32.gmra.mrb[0].mxu0 %v695
        %v763 = vpop.f32.mrb[0].mxu0
        %v764 = vadd.f32 0.0, %v763
        %v765 = vpop.f32.mrb[0].mxu0
        %766 = vdwg.mxu0
        %767 = vrot.lane.b32.xlu0 %v357, 64
        %v768 = vpop.permute.xlu0 %767
        %v771 = vsel %vm364, %v686, 0
        %773 = vmatprep.subr.mxu0 0.0
        %774 = vmatpush1.msra.mxu0 %v768
        %775 = vmatprep.subr.mxu0 0.0
        %776 = vmatpush1.msra.mxu0 0.0
        %777 = vmatprep.subr.mxu0 0.0
        %778 = vmatpush1.msra.mxu0 0.0
        %779 = vmatprep.subr.mxu0 0.0
        %780 = vmatpush1.msra.mxu0 0.0
        %781 = vmatprep.subr.mxu0 0.0
        %782 = vmatpush1.msra.mxu0 0.0
        %783 = vmatprep.subr.mxu0 0.0
        %784 = vmatpush1.msra.mxu0 0.0
        %785 = vmatprep.subr.mxu0 0.0
        %786 = vmatpush1.msra.mxu0 0.0
        %787 = vmatprep.subr.mxu0 0.0
        %788 = vmatpush1.msra.mxu0 0.0
        %789 = vmatprep.subr.mxu0 0.0
        %790 = vmatpush1.msra.mxu0 0.0
        %791 = vmatprep.subr.mxu0 0.0
        %792 = vmatpush1.msra.mxu0 0.0
        %793 = vmatprep.subr.mxu0 0.0
        %794 = vmatpush1.msra.mxu0 0.0
        %795 = vmatprep.subr.mxu0 0.0
        %796 = vmatpush1.msra.mxu0 0.0
        %797 = vmatprep.subr.mxu0 0.0
        %798 = vmatpush1.msra.mxu0 0.0
        %799 = vmatprep.subr.mxu0 0.0
        %800 = vmatpush1.msra.mxu0 0.0
        %801 = vmatprep.subr.mxu0 0.0
        %802 = vmatpush1.msra.mxu0 0.0
        %803 = vmatprep.subr.mxu0 0.0
        %804 = vmatpush1.msra.mxu0 0.0
        %805 = vmatprep.subr.mxu0 0.0
        %806 = vmatpush1.msra.mxu0 0.0
        %807 = vmatprep.subr.mxu0 0.0
        %808 = vmatpush1.msra.mxu0 0.0
        %809 = vmatprep.subr.mxu0 0.0
        %810 = vmatpush1.msra.mxu0 0.0
        %811 = vmatprep.subr.mxu0 0.0
        %812 = vmatpush1.msra.mxu0 0.0
        %813 = vmatprep.subr.mxu0 0.0
        %814 = vmatpush1.msra.mxu0 0.0
        %815 = vmatprep.subr.mxu0 0.0
        %816 = vmatpush1.msra.mxu0 0.0
        %817 = vmatprep.subr.mxu0 0.0
        %818 = vmatpush1.msra.mxu0 0.0
        %819 = vmatprep.subr.mxu0 0.0
        %820 = vmatpush1.msra.mxu0 0.0
        %821 = vmatprep.subr.mxu0 0.0
        %822 = vmatpush1.msra.mxu0 0.0
        %823 = vmatprep.subr.mxu0 0.0
        %824 = vmatpush1.msra.mxu0 0.0
        %825 = vmatprep.subr.mxu0 0.0
        %826 = vmatpush1.msra.mxu0 0.0
        %827 = vmatprep.subr.mxu0 0.0
        %828 = vmatpush1.msra.mxu0 0.0
        %829 = vmatprep.subr.mxu0 0.0
        %830 = vmatpush1.msra.mxu0 0.0
        %831 = vmatprep.subr.mxu0 0.0
        %832 = vmatpush1.msra.mxu0 0.0
        %833 = vmatprep.subr.mxu0 0.0
        %834 = vmatpush1.msra.mxu0 0.0
        %835 = vmatprep.subr.mxu0 0.0
        %836 = vmatpush1.msra.mxu0 0.0
        %837 = vmatprep.mubr.f32.mxu0 0.0
        %838 = vmatmul.mubr.f32.gmra.mrb[0].mxu0 %v771
        %v839 = vpop.f32.mrb[0].mxu0
        %v840 = vadd.f32 0.0, %v839
        %v841 = vpop.f32.mrb[0].mxu0
        %842 = vdwg.mxu0
        %843 = vrot.lane.b32.xlu0 %v359, 64
        %v844 = vpop.permute.xlu0 %843
        %v847 = vsel %vm364, %v688, 0
        %849 = vmatprep.subr.mxu0 0.0
        %850 = vmatpush1.msra.mxu0 %v844
        %851 = vmatprep.subr.mxu0 0.0
        %852 = vmatpush1.msra.mxu0 0.0
        %853 = vmatprep.subr.mxu0 0.0
        %854 = vmatpush1.msra.mxu0 0.0
        %855 = vmatprep.subr.mxu0 0.0
        %856 = vmatpush1.msra.mxu0 0.0
        %857 = vmatprep.subr.mxu0 0.0
        %858 = vmatpush1.msra.mxu0 0.0
        %859 = vmatprep.subr.mxu0 0.0
        %860 = vmatpush1.msra.mxu0 0.0
        %861 = vmatprep.subr.mxu0 0.0
        %862 = vmatpush1.msra.mxu0 0.0
        %863 = vmatprep.subr.mxu0 0.0
        %864 = vmatpush1.msra.mxu0 0.0
        %865 = vmatprep.subr.mxu0 0.0
        %866 = vmatpush1.msra.mxu0 0.0
        %867 = vmatprep.subr.mxu0 0.0
        %868 = vmatpush1.msra.mxu0 0.0
        %869 = vmatprep.subr.mxu0 0.0
        %870 = vmatpush1.msra.mxu0 0.0
        %871 = vmatprep.subr.mxu0 0.0
        %872 = vmatpush1.msra.mxu0 0.0
        %873 = vmatprep.subr.mxu0 0.0
        %874 = vmatpush1.msra.mxu0 0.0
        %875 = vmatprep.subr.mxu0 0.0
        %876 = vmatpush1.msra.mxu0 0.0
        %877 = vmatprep.subr.mxu0 0.0
        %878 = vmatpush1.msra.mxu0 0.0
        %879 = vmatprep.subr.mxu0 0.0
        %880 = vmatpush1.msra.mxu0 0.0
        %881 = vmatprep.subr.mxu0 0.0
        %882 = vmatpush1.msra.mxu0 0.0
        %883 = vmatprep.subr.mxu0 0.0
        %884 = vmatpush1.msra.mxu0 0.0
        %885 = vmatprep.subr.mxu0 0.0
        %886 = vmatpush1.msra.mxu0 0.0
        %887 = vmatprep.subr.mxu0 0.0
        %888 = vmatpush1.msra.mxu0 0.0
        %889 = vmatprep.subr.mxu0 0.0
        %890 = vmatpush1.msra.mxu0 0.0
        %891 = vmatprep.subr.mxu0 0.0
        %892 = vmatpush1.msra.mxu0 0.0
        %893 = vmatprep.subr.mxu0 0.0
        %894 = vmatpush1.msra.mxu0 0.0
        %895 = vmatprep.subr.mxu0 0.0
        %896 = vmatpush1.msra.mxu0 0.0
        %897 = vmatprep.subr.mxu0 0.0
        %898 = vmatpush1.msra.mxu0 0.0
        %899 = vmatprep.subr.mxu0 0.0
        %900 = vmatpush1.msra.mxu0 0.0
        %901 = vmatprep.subr.mxu0 0.0
        %902 = vmatpush1.msra.mxu0 0.0
        %903 = vmatprep.subr.mxu0 0.0
        %904 = vmatpush1.msra.mxu0 0.0
        %905 = vmatprep.subr.mxu0 0.0
        %906 = vmatpush1.msra.mxu0 0.0
        %907 = vmatprep.subr.mxu0 0.0
        %908 = vmatpush1.msra.mxu0 0.0
        %909 = vmatprep.subr.mxu0 0.0
        %910 = vmatpush1.msra.mxu0 0.0
        %911 = vmatprep.subr.mxu0 0.0
        %912 = vmatpush1.msra.mxu0 0.0
        %913 = vmatprep.mubr.f32.mxu0 0.0
        %914 = vmatmul.mubr.f32.gmra.mrb[0].mxu0 %v847
        %v915 = vpop.f32.mrb[0].mxu0
        %v916 = vadd.f32 0.0, %v915
        %v917 = vpop.f32.mrb[0].mxu0
        %918 = vdwg.mxu0
        %919 = vrot.lane.b32.xlu0 %v361, 64
        %v920 = vpop.permute.xlu0 %919
        %v923 = vsel %vm364, %v690, 0
        %925 = vmatprep.subr.mxu0 0.0
        %926 = vmatpush1.msra.mxu0 %v920
        %927 = vmatprep.subr.mxu0 0.0
        %928 = vmatpush1.msra.mxu0 0.0
        %929 = vmatprep.subr.mxu0 0.0
        %930 = vmatpush1.msra.mxu0 0.0
        %931 = vmatprep.subr.mxu0 0.0
        %932 = vmatpush1.msra.mxu0 0.0
        %933 = vmatprep.subr.mxu0 0.0
        %934 = vmatpush1.msra.mxu0 0.0
        %935 = vmatprep.subr.mxu0 0.0
        %936 = vmatpush1.msra.mxu0 0.0
        %937 = vmatprep.subr.mxu0 0.0
        %938 = vmatpush1.msra.mxu0 0.0
        %939 = vmatprep.subr.mxu0 0.0
        %940 = vmatpush1.msra.mxu0 0.0
        %941 = vmatprep.subr.mxu0 0.0
        %942 = vmatpush1.msra.mxu0 0.0
        %943 = vmatprep.subr.mxu0 0.0
        %944 = vmatpush1.msra.mxu0 0.0
        %945 = vmatprep.subr.mxu0 0.0
        %946 = vmatpush1.msra.mxu0 0.0
        %947 = vmatprep.subr.mxu0 0.0
        %948 = vmatpush1.msra.mxu0 0.0
        %949 = vmatprep.subr.mxu0 0.0
        %950 = vmatpush1.msra.mxu0 0.0
        %951 = vmatprep.subr.mxu0 0.0
        %952 = vmatpush1.msra.mxu0 0.0
        %953 = vmatprep.subr.mxu0 0.0
        %954 = vmatpush1.msra.mxu0 0.0
        %955 = vmatprep.subr.mxu0 0.0
        %956 = vmatpush1.msra.mxu0 0.0
        %957 = vmatprep.subr.mxu0 0.0
        %958 = vmatpush1.msra.mxu0 0.0
        %959 = vmatprep.subr.mxu0 0.0
        %960 = vmatpush1.msra.mxu0 0.0
        %961 = vmatprep.subr.mxu0 0.0
        %962 = vmatpush1.msra.mxu0 0.0
        %963 = vmatprep.subr.mxu0 0.0
        %964 = vmatpush1.msra.mxu0 0.0
        %965 = vmatprep.subr.mxu0 0.0
        %966 = vmatpush1.msra.mxu0 0.0
        %967 = vmatprep.subr.mxu0 0.0
        %968 = vmatpush1.msra.mxu0 0.0
        %969 = vmatprep.subr.mxu0 0.0
        %970 = vmatpush1.msra.mxu0 0.0
        %971 = vmatprep.subr.mxu0 0.0
        %972 = vmatpush1.msra.mxu0 0.0
        %973 = vmatprep.subr.mxu0 0.0
        %974 = vmatpush1.msra.mxu0 0.0
        %975 = vmatprep.subr.mxu0 0.0
        %976 = vmatpush1.msra.mxu0 0.0
        %977 = vmatprep.subr.mxu0 0.0
        %978 = vmatpush1.msra.mxu0 0.0
        %979 = vmatprep.subr.mxu0 0.0
        %980 = vmatpush1.msra.mxu0 0.0
        %981 = vmatprep.subr.mxu0 0.0
        %982 = vmatpush1.msra.mxu0 0.0
        %983 = vmatprep.subr.mxu0 0.0
        %984 = vmatpush1.msra.mxu0 0.0
        %985 = vmatprep.subr.mxu0 0.0
        %986 = vmatpush1.msra.mxu0 0.0
        %987 = vmatprep.subr.mxu0 0.0
        %988 = vmatpush1.msra.mxu0 0.0
        %989 = vmatprep.mubr.f32.mxu0 0.0
        %990 = vmatmul.mubr.f32.gmra.mrb[0].mxu0 %v923
        %v991 = vpop.f32.mrb[0].mxu0
        %v992 = vadd.f32 0.0, %v991
        %v993 = vpop.f32.mrb[0].mxu0
        %994 = vdwg.mxu0
        %v995 = vsel %vm364, %v684, 0.0
        %996 = vadd.xlane.f32.xlu0 %v995
        %v997 = vpop.xlane.xlu0 %996
        %v998 = vsel %vm364, %v686, 0.0
        %999 = vadd.xlane.f32.xlu0 %v998
        %v1000 = vpop.xlane.xlu0 %999
        %v1001 = vsel %vm364, %v688, 0.0
        %1002 = vadd.xlane.f32.xlu0 %v1001
        %v1003 = vpop.xlane.xlu0 %1002
        %v1004 = vsel %vm364, %v690, 0.0
        %1005 = vadd.xlane.f32.xlu0 %v1004
        %v1006 = vpop.xlane.xlu0 %1005
        %v1007 = vrcp.pop %v997
        %v1008 = vrcp.pop %v1000
        %v1009 = vrcp.pop %v1003
        %v1010 = vrcp.pop %v1006
        %v1011 = vmul.f32 %v764, %v1007
        %v1012 = vmul.f32 %v840, %v1008
        %v1013 = vmul.f32 %v916, %v1009
        %v1014 = vmul.f32 %v992, %v1010
        %1015 = vst.msk [vmem:[#allocation2] sm:$0xff] %vm364, %v1011
        %1017 = vrot.lane.b32.xlu0 %v1012, 8
        %v1018 = vpop.permute.xlu0 %1017
        %vm1020 = vcmask 130112
        %1021 = vst.msk [vmem:[#allocation2] sm:$0xff] %vm1020, %v1018
        %1023 = vrot.lane.b32.xlu0 %v1013, 16
        %v1024 = vpop.permute.xlu0 %1023
        %vm1026 = vcmask 195712
        %1027 = vst.msk [vmem:[#allocation2] sm:$0xff] %vm1026, %v1024
        %1029 = vrot.lane.b32.xlu0 %v1014, 24
        %v1030 = vpop.permute.xlu0 %1029
        %vm1032 = vcmask 261312
        %1033 = vst.msk [vmem:[#allocation2] sm:$0xff] %vm1032, %v1030
        %v1034 = vld [vmem:[#allocation2] sm:$0xff]
        %v1035 = vld [vmem:[#allocation8] sm:$0xff]
        %v1036 = vld [vmem:[#allocation8 + $0x8] sm:$0xff]
        %v1037 = vld [vmem:[#allocation8 + $0x10] sm:$0xff]
        %v1038 = vld [vmem:[#allocation8 + $0x18] sm:$0xff]
        %v1039 = vld [vmem:[%s4] sm:$0x1]
        %v1041 = vlaneseq
        %v1042 = vshrl.u32 %v1041, 7
        %v1043 = vsub.s32 0, %v1042
        %v1044 = vrot.slane %v1039, %v1043
        %v1047 = vsel %vm281, %v1034, 0
        %1049 = vmatprep.subr.mxu0 0.0
        %1050 = vmatpush1.msra.mxu0 %v1035
        %1051 = vmatprep.subr.mxu0 0.0
        %1052 = vmatpush1.msra.mxu0 %v1036
        %1053 = vmatprep.subr.mxu0 0.0
        %1054 = vmatpush1.msra.mxu0 %v1037
        %1055 = vmatprep.subr.mxu0 0.0
        %1056 = vmatpush1.msra.mxu0 %v1038
        %1057 = vmatprep.subr.mxu0 0.0
        %1058 = vmatpush1.msra.mxu0 0.0
        %1059 = vmatprep.subr.mxu0 0.0
        %1060 = vmatpush1.msra.mxu0 0.0
        %1061 = vmatprep.subr.mxu0 0.0
        %1062 = vmatpush1.msra.mxu0 0.0
        %1063 = vmatprep.subr.mxu0 0.0
        %1064 = vmatpush1.msra.mxu0 0.0
        %1065 = vmatprep.subr.mxu0 0.0
        %1066 = vmatpush1.msra.mxu0 0.0
        %1067 = vmatprep.subr.mxu0 0.0
        %1068 = vmatpush1.msra.mxu0 0.0
        %1069 = vmatprep.subr.mxu0 0.0
        %1070 = vmatpush1.msra.mxu0 0.0
        %1071 = vmatprep.subr.mxu0 0.0
        %1072 = vmatpush1.msra.mxu0 0.0
        %1073 = vmatprep.subr.mxu0 0.0
        %1074 = vmatpush1.msra.mxu0 0.0
        %1075 = vmatprep.subr.mxu0 0.0
        %1076 = vmatpush1.msra.mxu0 0.0
        %1077 = vmatprep.subr.mxu0 0.0
        %1078 = vmatpush1.msra.mxu0 0.0
        %1079 = vmatprep.subr.mxu0 0.0
        %1080 = vmatpush1.msra.mxu0 0.0
        %1081 = vmatprep.subr.mxu0 0.0
        %1082 = vmatpush1.msra.mxu0 0.0
        %1083 = vmatprep.subr.mxu0 0.0
        %1084 = vmatpush1.msra.mxu0 0.0
        %1085 = vmatprep.subr.mxu0 0.0
        %1086 = vmatpush1.msra.mxu0 0.0
        %1087 = vmatprep.subr.mxu0 0.0
        %1088 = vmatpush1.msra.mxu0 0.0
        %1089 = vmatprep.subr.mxu0 0.0
        %1090 = vmatpush1.msra.mxu0 0.0
        %1091 = vmatprep.subr.mxu0 0.0
        %1092 = vmatpush1.msra.mxu0 0.0
        %1093 = vmatprep.subr.mxu0 0.0
        %1094 = vmatpush1.msra.mxu0 0.0
        %1095 = vmatprep.subr.mxu0 0.0
        %1096 = vmatpush1.msra.mxu0 0.0
        %1097 = vmatprep.subr.mxu0 0.0
        %1098 = vmatpush1.msra.mxu0 0.0
        %1099 = vmatprep.subr.mxu0 0.0
        %1100 = vmatpush1.msra.mxu0 0.0
        %1101 = vmatprep.subr.mxu0 0.0
        %1102 = vmatpush1.msra.mxu0 0.0
        %1103 = vmatprep.subr.mxu0 0.0
        %1104 = vmatpush1.msra.mxu0 0.0
        %1105 = vmatprep.subr.mxu0 0.0
        %1106 = vmatpush1.msra.mxu0 0.0
        %1107 = vmatprep.subr.mxu0 0.0
        %1108 = vmatpush1.msra.mxu0 0.0
        %1109 = vmatprep.subr.mxu0 0.0
        %1110 = vmatpush1.msra.mxu0 0.0
        %1111 = vmatprep.subr.mxu0 0.0
        %1112 = vmatpush1.msra.mxu0 0.0
        %1113 = vmatprep.mubr.f32.mxu0 0.0
        %1114 = vmatmul.mubr.f32.gmra.mrb[0].mxu0 %v1047
        %v1115 = vpop.f32.mrb[0].mxu0
        %v1116 = vadd.f32 %v1044, %v1115
        %v1117 = vpop.f32.mrb[0].mxu0
        %1118 = vdwg.mxu0
        %1119 = vst.msk [vmem:[%s268] sm:$0xff] %vm281, %v1116
        %s1120 = sand.u32 %s141, 1
        %s1121 = scalar_lea.sflag [#allocation5], %s1120
        %s1122 = sand.u32 %s141, 1
        %s1123 = smul.addr %s1122, 8
        %s1124 = scalar_lea.vmem [#allocation9], %s1123
        // Predicated region
        $region53: #{tpu_custom_call.1} parent=39 // pred_check
          %p1125 = pneg %p151
        $region54: #{tpu_custom_call.1} parent=39 // pred_check_branch
          %1127 = sbr.rel (%p1125) target = $region56
        $region55: #{tpu_custom_call.1} parent=39 // pred_region
          %s1129 = ssub.s32 128, 128
          %1130 = vsyncadd %s1121, %s1129
          %s1131 = smul.addr %s23, 128
          %s1132 = scalar_lea.hbm %s5, %s1131
          %s1134 = sshll.u32 %s1124, 4
          %s1135 = int_to_ptr.vmem [resolvable:$true] %s1134
          %1137 = dma.vmem_to_hbm [thread:$0]  %s1135, 128, %s1132, %s1121
        $region56: #{tpu_custom_call.1} parent=39 // pred_fallthru
          _
      $region40: #{tpu_custom_call.1} parent=5 // pred_fallthru
        _
      %p1138 = scmp.le.s32.totalorder 2, %s18
      // Predicated region
      $region57: #{tpu_custom_call.1} parent=5 // pred_check
        %p1139 = pneg %p1138
      $region58: #{tpu_custom_call.1} parent=5 // pred_check_branch
        %1141 = sbr.rel (%p1139) target = $region60
      $region59: #{tpu_custom_call.1} parent=5 // pred_region
        %s1142 = ssub.s32 %s18, 2
        // Predicated region
        $region61: #{tpu_custom_call.1} parent=59 // pred_check
          %p1143 = pneg %p157
        $region62: #{tpu_custom_call.1} parent=59 // pred_check_branch
          %1145 = sbr.rel (%p1143) target = $region64
        $region63: #{tpu_custom_call.1} parent=59 // pred_region
          %s1146 = sand.u32 %s142, 1
          %s1147 = scalar_lea.sflag [#allocation5], %s1146
          %s1148 = sand.u32 %s142, 1
          %s1149 = smul.addr %s1148, 8
          %s1150 = scalar_lea.vmem [#allocation9], %s1149
          %1151 = dma.done %s1147, 128
        $region64: #{tpu_custom_call.1} parent=59 // pred_fallthru
          _
      $region60: #{tpu_custom_call.1} parent=5 // pred_fallthru
        _
    $region6: #{tpu_custom_call.1} parent=1 // loop_footer
      %s22 = sadd.s32 1, %s18
    $region7: #{tpu_custom_call.1} parent=1 // loop_footer_branch
      %17 = sbr.rel target = $region3
    $region8: #{tpu_custom_call.1} parent=1 // loop_exit
      _
    %1152 = vsyncpa [#allocation4], 1
    %s1153 = scalar_lea.sflag [#allocation4], 1
    %1154 = vsyncpa %s1153, 1
    %1155 = vsyncpa [#allocation7], 1
    %1156 = vsyncpa [#allocation5], 1
    %s1157 = scalar_lea.sflag [#allocation5], 1
    %1158 = vsyncpa %s1157, 1

</llo_original>
